<compile_context>
chip_gen: v7x
topology: tpu7x:2x2x1
jax: 0.10.0
libtpu: 0.0.40
codegen_flags: <defaults>
</compile_context>

<pallas_src>
import functools
import math

import jax
import jax.numpy as jnp
from jax.experimental import pallas as pl
from jax.experimental.pallas import tpu as pltpu

TEMPERATURE = 0.3
_EPS2 = 1e-24  # (1e-12)^2 : rsqrt(max(sumsq, eps^2)) == 1 / max(||x||_2, 1e-12)


def _normalize_f32(x):
    x = x.astype(jnp.float32)
    ssq = jnp.sum(x * x, axis=1, keepdims=True)
    return x * jax.lax.rsqrt(jnp.maximum(ssq, _EPS2))


def _global_align_kernel(*refs, need_mask):
    # refs = (img_ref, txt_ref, [bias_ref], logden_ref, m_scr, l_scr)
    if need_mask:
        img_ref, txt_ref, bias_ref, logden_ref, m_scr, l_scr = refs
    else:
        img_ref, txt_ref, logden_ref, m_scr, l_scr = refs
        bias_ref = None

    k = pl.program_id(1)
    nk = pl.num_programs(1)

    @pl.when(k == 0)
    def _init():
        m_scr[...] = jnp.full(m_scr.shape, -jnp.inf, dtype=jnp.float32)
        l_scr[...] = jnp.zeros(l_scr.shape, dtype=jnp.float32)

    # Similarity block, already scaled by 1/T (folded into the image stream).
    # Contract last dims directly (no transpose / relayout), accumulate in f32.
    s = jax.lax.dot_general(
        img_ref[...], txt_ref[...],
        dimension_numbers=(((1,), (1,)), ((), ())),
        preferred_element_type=jnp.float32)            # (TQ, TK) f32

    if need_mask:  # static: only emitted when the batch was padded
        # Additive bias row: 0 for valid columns, -1e30 for padded columns.
        s = s + bias_ref[...]                          # (1, TK) broadcast

    # Online row-max / exp-sum (1/T already folded into s).
    m_prev = m_scr[...]
    m_new = jnp.maximum(m_prev, jnp.max(s, axis=1, keepdims=True))
    alpha = jnp.exp(m_prev - m_new)
    l_scr[...] = alpha * l_scr[...] + jnp.sum(jnp.exp(s - m_new),
                                              axis=1, keepdims=True)
    m_scr[...] = m_new

    @pl.when(k == nk - 1)
    def _finalize():
        # Matches the reference: the per-row max is intentionally NOT added back.
        logden_ref[...] = jnp.log(l_scr[...])


def global_align(text_features, image_features, *, temperature=TEMPERATURE,
                 use_bf16_matmul=True, block_q=1024, block_k=512):
    """Contrastive global-alignment loss. block_q ~1024 is a good default for
    v5e/v6e; on v7x pick block_q <= B/2 for large batches so both TensorCores
    get q blocks."""
    B, D = text_features.shape
    assert image_features.shape == (B, D)

    mm_dtype = jnp.bfloat16 if use_bf16_matmul else jnp.float32
    grain = 16 if use_bf16_matmul else 8   # sublane granularity per dtype

    def round_up(x, m):
        return (x + m - 1) // m * m

    inv_t = 1.0 / temperature

    # ---- O(B*D) work in XLA (fused, free): normalization + positives --------
    img_n = _normalize_f32(image_features)
    txt_n = _normalize_f32(text_features)
    pos = jnp.sum(img_n * txt_n, axis=1) * inv_t       # (B,) f32 diagonal logits

    # ---- tile / padding selection -------------------------------------------
    tq = min(block_q, round_up(B, grain))
    tk = min(block_k, round_up(B, grain))
    b_pad = round_up(B, math.lcm(tq, tk))
    d_pad = round_up(D, 128)                            # lane-aligned feature dim
    need_mask = b_pad != B

    # 1/T folded into the (pre-normalized, pre-cast) image stream so the kernel
    # matmul yields sim/T directly; text shipped in mm_dtype (bf16 fast path).
    img_k = jnp.pad(img_n * inv_t,
                    ((0, b_pad - B), (0, d_pad - D))).astype(mm_dtype)
    txt_k = jnp.pad(txt_n,
                    ((0, b_pad - B), (0, d_pad - D))).astype(mm_dtype)

    inputs = [img_k, txt_k]
    in_specs = [
        pl.BlockSpec((tq, d_pad), lambda q, k: (q, 0)),   # image rows (resident over k)
        pl.BlockSpec((tk, d_pad), lambda q, k: (k, 0)),   # text rows (streamed over k)
    ]
    if need_mask:
        nk = b_pad // tk
        cols = jnp.arange(b_pad, dtype=jnp.int32).reshape(nk, 1, tk)
        bias = jnp.where(cols < B, 0.0, -1e30).astype(jnp.float32)  # (nk, 1, tk)
        inputs.append(bias)
        # Block (1, tk) == full trailing dims of the bias array -> always legal.
        in_specs.append(pl.BlockSpec((None, 1, tk), lambda q, k: (k, 0, 0)))

    kernel = functools.partial(_global_align_kernel, need_mask=need_mask)

    # Scoped-VMEM budget: double-buffered blocks + tiny scratch, with headroom.
    esize = jnp.dtype(mm_dtype).itemsize
    blk_bytes = 2 * (tq + tk) * d_pad * esize           # double-buffered operands
    blk_bytes += 2 * tq * 4 + 2 * tq * 4 * 2            # output block + scratch
    if need_mask:
        blk_bytes += 2 * tk * 4
    vmem_limit = int(min(100 * 1024 * 1024,
                         max(32 * 1024 * 1024, 3 * blk_bytes)))

    logden = pl.pallas_call(
        kernel,
        out_shape=jax.ShapeDtypeStruct((b_pad, 1), jnp.float32),
        grid_spec=pltpu.PrefetchScalarGridSpec(
            num_scalar_prefetch=0,
            grid=(b_pad // tq, b_pad // tk),
            in_specs=in_specs,
            out_specs=pl.BlockSpec((tq, 1), lambda q, k: (q, 0)),
            scratch_shapes=[
                pltpu.VMEM((tq, 1), jnp.float32),  # running row max of sim/T
                pltpu.VMEM((tq, 1), jnp.float32),  # running exp-sum
            ]),
        compiler_params=pltpu.CompilerParams(
            dimension_semantics=("parallel", "arbitrary"),
            vmem_limit_bytes=vmem_limit),
    )(*inputs)

    logden = logden[:B, 0]
    # loss = -mean(pos - max(pos) - log(den)) = max(pos) - mean(pos - log(den))
    return jnp.max(pos) - jnp.mean(pos - logden)


def _reference(text_features, image_features, temperature=TEMPERATURE):
    # Pure-JAX f32 reference mirroring the PyTorch forward.
    eps = 1e-12
    img = image_features / jnp.maximum(
        jnp.linalg.norm(image_features, axis=1, keepdims=True), eps)
    txt = text_features / jnp.maximum(
        jnp.linalg.norm(text_features, axis=1, keepdims=True), eps)
    sim = img @ txt.T
    pos = jnp.diag(sim) / temperature
    neg = sim / temperature
    neg = neg - jnp.max(neg, axis=1, keepdims=True)
    logits_max = jnp.max(pos)
    loss = jnp.mean(jnp.log(jnp.exp(pos - logits_max) / jnp.sum(jnp.exp(neg), axis=1)))
    return -loss


if __name__ == "__main__":
    key = jax.random.PRNGKey(0)
    k1, k2, k3, k4 = jax.random.split(key, 4)

    # Case 1: small single-block grid (B=8, D=32).
    B, D = 8, 32
    text = jax.random.normal(k1, (B, D), dtype=jnp.float32)
    image = jax.random.normal(k2, (B, D), dtype=jnp.float32)
    ref = _reference(text, image)

    loss_f32 = global_align(text, image, use_bf16_matmul=False)
    jax.block_until_ready(loss_f32)
    assert jnp.allclose(loss_f32, ref, atol=1e-5, rtol=1e-5), (loss_f32, ref)

    loss_bf16 = global_align(text, image)  # bf16 fast path (pads B to grain 16)
    jax.block_until_ready(loss_bf16)
    assert jnp.allclose(loss_bf16, ref, atol=3e-2, rtol=3e-2), (loss_bf16, ref)

    # Case 2: multi-block grid + padding/masking path (B not a block multiple), f32.
    B2, D2 = 20, 32
    text2 = jax.random.normal(k3, (B2, D2), dtype=jnp.float32)
    image2 = jax.random.normal(k4, (B2, D2), dtype=jnp.float32)
    ref2 = _reference(text2, image2)
    loss2 = global_align(text2, image2, use_bf16_matmul=False, block_q=8, block_k=8)
    jax.block_until_ready(loss2)
    assert jnp.allclose(loss2, ref2, atol=1e-5, rtol=1e-5), (loss2, ref2)

    # Case 3: multi-block grid + masking on the bf16 fast path (grain-16 tiles).
    loss3 = global_align(text2, image2, block_q=16, block_k=16)
    jax.block_until_ready(loss3)
    assert jnp.allclose(loss3, ref2, atol=3e-2, rtol=3e-2), (loss3, ref2)

    print("KERNEL_OK")
</pallas_src>

<mosaic_0001>
module attributes {stable_mosaic.version = 11 : i64} {
  func.func @_global_align_kernel(%arg0: i32, %arg1: i32, %arg2: memref<8x128xf32, #tpu.memory_space<vmem>>, %arg3: memref<8x128xf32, #tpu.memory_space<vmem>>, %arg4: memref<8x1xf32, #tpu.memory_space<vmem>>, %arg5: memref<8x1xf32, #tpu.memory_space<vmem>>, %arg6: memref<8x1xf32, #tpu.memory_space<vmem>>) attributes {dimension_semantics = [#tpu.dimension_semantics<parallel>, #tpu.dimension_semantics<arbitrary>], iteration_bounds = array<i64: 1, 1>, scalar_prefetch = 0 : i64, scratch_operands = 2 : i64, tpu.core_type = #tpu.core_type<tc>, window_params = [{transform_indices = @transform_0, window_bounds = array<i64: 8, 128>}, {transform_indices = @transform_1, window_bounds = array<i64: 8, 128>}, {transform_indices = @transform_2, window_bounds = array<i64: 8, 1>}]} {
    %c0_i32 = arith.constant 0 : i32
    %0 = arith.cmpi eq, %arg1, %c0_i32 : i32
    %1 = arith.extui %0 : i1 to i32
    %c0_i32_0 = arith.constant 0 : i32
    %2 = arith.cmpi ne, %1, %c0_i32_0 : i32
    scf.if %2 {
      %cst_16 = arith.constant 0xFF800000 : f32
      %25 = vector.broadcast %cst_16 : f32 to vector<8x1xf32>
      %c0_17 = arith.constant 0 : index
      %c0_18 = arith.constant 0 : index
      %26 = vector.load %arg5[%c0_17, %c0_18] : memref<8x1xf32, #tpu.memory_space<vmem>>, vector<8x1xf32>
      tpu.vector_store %arg5[%c0_17, %c0_18], %25 {strides = array<i32>} : memref<8x1xf32, #tpu.memory_space<vmem>>, vector<8x1xf32>,
      %cst_19 = arith.constant 0.000000e+00 : f32
      %27 = vector.broadcast %cst_19 : f32 to vector<8x1xf32>
      %c0_20 = arith.constant 0 : index
      %c0_21 = arith.constant 0 : index
      %28 = vector.load %arg6[%c0_20, %c0_21] : memref<8x1xf32, #tpu.memory_space<vmem>>, vector<8x1xf32>
      tpu.vector_store %arg6[%c0_20, %c0_21], %27 {strides = array<i32>} : memref<8x1xf32, #tpu.memory_space<vmem>>, vector<8x1xf32>,
    } else {
    }
    %c0 = arith.constant 0 : index
    %c0_1 = arith.constant 0 : index
    %3 = vector.load %arg2[%c0, %c0_1] : memref<8x128xf32, #tpu.memory_space<vmem>>, vector<8x128xf32>
    %c0_2 = arith.constant 0 : index
    %c0_3 = arith.constant 0 : index
    %4 = vector.load %arg3[%c0_2, %c0_3] : memref<8x128xf32, #tpu.memory_space<vmem>>, vector<8x128xf32>
    %cst = arith.constant dense<0.000000e+00> : vector<8x8xf32>
    %5 = tpu.matmul %3, %4, %cst {dimension_numbers = #tpu.dot_dimension_numbers<[1], [1], [0], [0], [0, 0, 1, 0], [], []>} : vector<8x128xf32>, vector<8x128xf32>, vector<8x8xf32> -> vector<8x8xf32>
    %c0_4 = arith.constant 0 : index
    %c0_5 = arith.constant 0 : index
    %6 = vector.load %arg5[%c0_4, %c0_5] : memref<8x1xf32, #tpu.memory_space<vmem>>, vector<8x1xf32>
    %cst_6 = arith.constant dense<0xFF800000> : vector<8xf32>
    %7 = vector.multi_reduction <maximumf>, %5, %cst_6 [1] : vector<8x8xf32> to vector<8xf32>
    %8 = vector.shape_cast %7 : vector<8xf32> to vector<8x1xf32>
    %9 = arith.maximumf %6, %8 : vector<8x1xf32>
    %10 = arith.subf %6, %9 : vector<8x1xf32>
    %11 = math.exp %10 : vector<8x1xf32>
    %c0_7 = arith.constant 0 : index
    %c0_8 = arith.constant 0 : index
    %12 = vector.load %arg6[%c0_7, %c0_8] : memref<8x1xf32, #tpu.memory_space<vmem>>, vector<8x1xf32>
    %13 = arith.mulf %11, %12 : vector<8x1xf32>
    %14 = vector.broadcast %9 : vector<8x1xf32> to vector<8x8xf32>
    %15 = arith.subf %5, %14 : vector<8x8xf32>
    %16 = math.exp %15 : vector<8x8xf32>
    %cst_9 = arith.constant dense<0.000000e+00> : vector<8xf32>
    %17 = vector.multi_reduction <add>, %16, %cst_9 [1] : vector<8x8xf32> to vector<8xf32>
    %18 = vector.shape_cast %17 : vector<8xf32> to vector<8x1xf32>
    %19 = arith.addf %13, %18 : vector<8x1xf32>
    %c0_10 = arith.constant 0 : index
    %c0_11 = arith.constant 0 : index
    %20 = vector.load %arg6[%c0_10, %c0_11] : memref<8x1xf32, #tpu.memory_space<vmem>>, vector<8x1xf32>
    tpu.vector_store %arg6[%c0_10, %c0_11], %19 {strides = array<i32>} : memref<8x1xf32, #tpu.memory_space<vmem>>, vector<8x1xf32>,
    %c0_12 = arith.constant 0 : index
    %c0_13 = arith.constant 0 : index
    %21 = vector.load %arg5[%c0_12, %c0_13] : memref<8x1xf32, #tpu.memory_space<vmem>>, vector<8x1xf32>
    tpu.vector_store %arg5[%c0_12, %c0_13], %9 {strides = array<i32>} : memref<8x1xf32, #tpu.memory_space<vmem>>, vector<8x1xf32>,
    %c0_i32_14 = arith.constant 0 : i32
    %22 = arith.cmpi eq, %arg1, %c0_i32_14 : i32
    %23 = arith.extui %22 : i1 to i32
    %c0_i32_15 = arith.constant 0 : i32
    %24 = arith.cmpi ne, %23, %c0_i32_15 : i32
    scf.if %24 {
      %c0_16 = arith.constant 0 : index
      %c0_17 = arith.constant 0 : index
      %25 = vector.load %arg6[%c0_16, %c0_17] : memref<8x1xf32, #tpu.memory_space<vmem>>, vector<8x1xf32>
      %26 = math.log %25 : vector<8x1xf32>
      %c0_18 = arith.constant 0 : index
      %c0_19 = arith.constant 0 : index
      %27 = vector.load %arg4[%c0_18, %c0_19] : memref<8x1xf32, #tpu.memory_space<vmem>>, vector<8x1xf32>
      tpu.vector_store %arg4[%c0_18, %c0_19], %26 {strides = array<i32>} : memref<8x1xf32, #tpu.memory_space<vmem>>, vector<8x1xf32>,
    } else {
    }
    return
  }
  func.func @transform_0(%arg0: i32, %arg1: i32) -> (i32, i32) {
    %c0_i32 = arith.constant 0 : i32
    %c0_i32_0 = arith.constant 0 : i32
    return %arg0, %c0_i32 : i32, i32
  }
  func.func @transform_1(%arg0: i32, %arg1: i32) -> (i32, i32) {
    %c0_i32 = arith.constant 0 : i32
    %c0_i32_0 = arith.constant 0 : i32
    return %arg1, %c0_i32 : i32, i32
  }
  func.func @transform_2(%arg0: i32, %arg1: i32) -> (i32, i32) {
    %c0_i32 = arith.constant 0 : i32
    %c0_i32_0 = arith.constant 0 : i32
    return %arg0, %c0_i32 : i32, i32
  }
}

</mosaic_0001>

<llo_original>
// kernel: tpu_custom_call.1
$region0: #{tpu_custom_call.1}
  #allocation0 [shape = 'u32[]', space=smem, size = 0x4, offset = 0x4, fixed_abs, tag = 'smem constant byte address 0x4 - core index']
  #allocation1 [shape = 'u32[144,128]{1,0:T(1,128)}', space=vmem, size = 0x12000, scoped, tag = 'internal scratch']
  #allocation2 [shape = 'f32[8,1]{1,0:T(8,128)}', space=vmem, size = 0x1000, scoped, tag = 'scratch operand']
  #allocation3 [shape = 'f32[8,1]{1,0:T(8,128)}', space=vmem, size = 0x1000, scoped, tag = 'scratch operand']
  %s0 = inlined_call_operand.hbm [shape: f32[8,128], index: 0, kind: input, shape index: {}]
  %s1 = inlined_call_operand.hbm [shape: f32[8,128], index: 1, kind: input, shape index: {}]
  %s2 = inlined_call_operand.vmem [shape: f32[8,1], index: 2, kind: output, shape index: {}]
  %s3 = sld [smem:[#allocation0]]
  $region34: #{tpu_custom_call.1} parent=0
    _
  %s5 = ssub.s32 1, %s3
  %s6 = scalar_select 0, %s5, %s3
  $region1: #{tpu_custom_call.1} parent=0
    #allocation4 [shape = 'u8[4096]{0}', space=vmem, size = 0x1000, scoped, tag = 'input window, operand 0, single buffered']
    #allocation5 [shape = 's32[1]{0}', space=sflag, size = 0x4, scoped, tag = 'scoped memory for tpu_custom_call.1']
    #allocation6 [shape = 'u8[4096]{0}', space=vmem, size = 0x1000, scoped, tag = 'input window, operand 1, single buffered']
    #allocation7 [shape = 's32[1]{0}', space=sflag, size = 0x4, scoped, tag = 'scoped memory for tpu_custom_call.1']
    %7 = vsyncpa [#allocation5], 0
    %8 = vsyncpa [#allocation7], 0
    // Predicated region
    $region2: #{tpu_custom_call.1} parent=1 // pred_check
      _
    $region3: #{tpu_custom_call.1} parent=1 // pred_check_branch
      %10 = sbr.rel (0) target = $region5
    $region4: #{tpu_custom_call.1} parent=1 // pred_region
      %s12 = ssub.s32 128, 128
      %13 = vsyncadd [#allocation5], %s12
      %s15 = sshll.u32 [#allocation4], 4
      %s16 = int_to_ptr.vmem [resolvable:$true] %s15
      %18 = dma.hbm_to_vmem [thread:$0]  %s0, 128, %s16, [#allocation5]
    $region5: #{tpu_custom_call.1} parent=1 // pred_fallthru
      _
    // Predicated region
    $region6: #{tpu_custom_call.1} parent=1 // pred_check
      _
    $region7: #{tpu_custom_call.1} parent=1 // pred_check_branch
      %20 = sbr.rel (0) target = $region9
    $region8: #{tpu_custom_call.1} parent=1 // pred_region
      %s22 = ssub.s32 128, 128
      %23 = vsyncadd [#allocation7], %s22
      %s25 = sshll.u32 [#allocation6], 4
      %s26 = int_to_ptr.vmem [resolvable:$true] %s25
      %28 = dma.hbm_to_vmem [thread:$0]  %s1, 128, %s26, [#allocation7]
    $region9: #{tpu_custom_call.1} parent=1 // pred_fallthru
      _
    // Predicated region
    $region10: #{tpu_custom_call.1} parent=1 // pred_check
      _
    $region11: #{tpu_custom_call.1} parent=1 // pred_check_branch
      %30 = sbr.rel (0) target = $region13
    $region12: #{tpu_custom_call.1} parent=1 // pred_region
      %31 = dma.done [#allocation5], 128
    $region13: #{tpu_custom_call.1} parent=1 // pred_fallthru
      _
    // Predicated region
    $region14: #{tpu_custom_call.1} parent=1 // pred_check
      _
    $region15: #{tpu_custom_call.1} parent=1 // pred_check_branch
      %33 = sbr.rel (0) target = $region17
    $region16: #{tpu_custom_call.1} parent=1 // pred_region
      %34 = dma.done [#allocation7], 128
    $region17: #{tpu_custom_call.1} parent=1 // pred_fallthru
      _
    %p35 = scmp.eq.s32.totalorder 0, 0
    // Predicated region
    $region18: #{tpu_custom_call.1} parent=1 // pred_check
      %p36 = pneg %p35
    $region19: #{tpu_custom_call.1} parent=1 // pred_check_branch
      %38 = sbr.rel (%p36) target = $region21
    $region20: #{tpu_custom_call.1} parent=1 // pred_region
      %vm39 = vcmask 7168
      %40 = vst.msk [vmem:[#allocation2] sm:$0xff] %vm39, -inf
      %41 = vst.msk [vmem:[#allocation3] sm:$0xff] %vm39, 0.0
    $region21: #{tpu_custom_call.1} parent=1 // pred_fallthru
      _
    %v42 = vld [vmem:[#allocation4] sm:$0xff]
    %v43 = vld [vmem:[#allocation6] sm:$0xff]
    %44 = vmatprep.subr.mxu0 0.0
    %45 = vmatpush1.xpose.msra.mxu0 %v43
    %46 = vmatprep.subr.mxu0 0.0
    %47 = vmatpush1.xpose.msra.mxu0 0.0
    %48 = vmatprep.subr.mxu0 0.0
    %49 = vmatpush1.xpose.msra.mxu0 0.0
    %50 = vmatprep.subr.mxu0 0.0
    %51 = vmatpush1.xpose.msra.mxu0 0.0
    %52 = vmatprep.subr.mxu0 0.0
    %53 = vmatpush1.xpose.msra.mxu0 0.0
    %54 = vmatprep.subr.mxu0 0.0
    %55 = vmatpush1.xpose.msra.mxu0 0.0
    %56 = vmatprep.subr.mxu0 0.0
    %57 = vmatpush1.xpose.msra.mxu0 0.0
    %58 = vmatprep.subr.mxu0 0.0
    %59 = vmatpush1.xpose.msra.mxu0 0.0
    %60 = vmatprep.subr.mxu0 0.0
    %61 = vmatpush1.xpose.msra.mxu0 0.0
    %62 = vmatprep.subr.mxu0 0.0
    %63 = vmatpush1.xpose.msra.mxu0 0.0
    %64 = vmatprep.subr.mxu0 0.0
    %65 = vmatpush1.xpose.msra.mxu0 0.0
    %66 = vmatprep.subr.mxu0 0.0
    %67 = vmatpush1.xpose.msra.mxu0 0.0
    %68 = vmatprep.subr.mxu0 0.0
    %69 = vmatpush1.xpose.msra.mxu0 0.0
    %70 = vmatprep.subr.mxu0 0.0
    %71 = vmatpush1.xpose.msra.mxu0 0.0
    %72 = vmatprep.subr.mxu0 0.0
    %73 = vmatpush1.xpose.msra.mxu0 0.0
    %74 = vmatprep.subr.mxu0 0.0
    %75 = vmatpush1.xpose.msra.mxu0 0.0
    %76 = vmatprep.subr.mxu0 0.0
    %77 = vmatpush1.xpose.msra.mxu0 0.0
    %78 = vmatprep.subr.mxu0 0.0
    %79 = vmatpush1.xpose.msra.mxu0 0.0
    %80 = vmatprep.subr.mxu0 0.0
    %81 = vmatpush1.xpose.msra.mxu0 0.0
    %82 = vmatprep.subr.mxu0 0.0
    %83 = vmatpush1.xpose.msra.mxu0 0.0
    %84 = vmatprep.subr.mxu0 0.0
    %85 = vmatpush1.xpose.msra.mxu0 0.0
    %86 = vmatprep.subr.mxu0 0.0
    %87 = vmatpush1.xpose.msra.mxu0 0.0
    %88 = vmatprep.subr.mxu0 0.0
    %89 = vmatpush1.xpose.msra.mxu0 0.0
    %90 = vmatprep.subr.mxu0 0.0
    %91 = vmatpush1.xpose.msra.mxu0 0.0
    %92 = vmatprep.subr.mxu0 0.0
    %93 = vmatpush1.xpose.msra.mxu0 0.0
    %94 = vmatprep.subr.mxu0 0.0
    %95 = vmatpush1.xpose.msra.mxu0 0.0
    %96 = vmatprep.subr.mxu0 0.0
    %97 = vmatpush1.xpose.msra.mxu0 0.0
    %98 = vmatprep.subr.mxu0 0.0
    %99 = vmatpush1.xpose.msra.mxu0 0.0
    %100 = vmatprep.subr.mxu0 0.0
    %101 = vmatpush1.xpose.msra.mxu0 0.0
    %102 = vmatprep.subr.mxu0 0.0
    %103 = vmatpush1.xpose.msra.mxu0 0.0
    %104 = vmatprep.subr.mxu0 0.0
    %105 = vmatpush1.xpose.msra.mxu0 0.0
    %106 = vmatprep.subr.mxu0 0.0
    %107 = vmatpush1.xpose.msra.mxu0 0.0
    %108 = vmatprep.mubr.f32.mxu0 0.0
    %109 = vmatmul.mubr.f32.gmra.mrb[0].mxu0 %v42
    %v110 = vpop.f32.mrb[0].mxu0
    %v111 = vadd.f32 0.0, %v110
    %v112 = vpop.f32.mrb[0].mxu0
    %113 = vdwg.mxu0
    %v114 = vld [vmem:[#allocation2] sm:$0xff]
    %vm115 = vcmask 64512
    %v116 = vsel %vm115, %v111, -inf
    %117 = vmax.xlane.f32.xlu0 %v116
    %v118 = vpop.xlane.xlu0 %117
    %v119 = vmax.f32 %v114, %v118
    %v120 = vsub.f32 %v114, %v119
    %v121 = vmul.f32 %v120, 1.442695
    %v122 = vpow.pop %v121
    %v123 = vld [vmem:[#allocation3] sm:$0xff]
    %v124 = vmul.f32 %v122, %v123
    %126 = vset.pattern.permute.xlu0 0
    %127 = vperm.xlu0 %126, %v119
    %v128 = vpop.permute.xlu0 %127
    %v130 = vsub.f32 %v111, %v128
    %v131 = vmul.f32 %v130, 1.442695
    %v132 = vpow.pop %v131
    %v133 = vsel %vm115, %v132, 0.0
    %134 = vadd.xlane.f32.xlu0 %v133
    %v135 = vpop.xlane.xlu0 %134
    %v136 = vadd.f32 %v124, %v135
    %vm137 = vcmask 7168
    %138 = vst.msk [vmem:[#allocation3] sm:$0xff] %vm137, %v136
    %139 = vst.msk [vmem:[#allocation2] sm:$0xff] %vm137, %v119
    // Predicated region
    $region22: #{tpu_custom_call.1} parent=1 // pred_check
      %p140 = pneg %p35
    $region23: #{tpu_custom_call.1} parent=1 // pred_check_branch
      %142 = sbr.rel (%p140) target = $region25
    $region24: #{tpu_custom_call.1} parent=1 // pred_region
      %v143 = vld [vmem:[#allocation3] sm:$0xff]
      %v144 = vlog2.pop %v143
      %v145 = vmul.f32 %v144, 0.6931472
      %146 = vst.msk [vmem:[%s2] sm:$0xff] %vm137, %v145
    $region25: #{tpu_custom_call.1} parent=1 // pred_fallthru
      _
    // Predicated region
    $region26: #{tpu_custom_call.1} parent=1 // pred_check
      _
    $region27: #{tpu_custom_call.1} parent=1 // pred_check_branch
      %148 = sbr.rel (0) target = $region29
    $region28: #{tpu_custom_call.1} parent=1 // pred_region
      _
    $region29: #{tpu_custom_call.1} parent=1 // pred_fallthru
      _
    // Predicated region
    $region30: #{tpu_custom_call.1} parent=1 // pred_check
      _
    $region31: #{tpu_custom_call.1} parent=1 // pred_check_branch
      %150 = sbr.rel (0) target = $region33
    $region32: #{tpu_custom_call.1} parent=1 // pred_region
      _
    $region33: #{tpu_custom_call.1} parent=1 // pred_fallthru
      _
    %151 = vsyncpa [#allocation5], 1
    %152 = vsyncpa [#allocation7], 1

</llo_original>
